<compile_context>
chip_gen: v7x
topology: tpu7x:2x2x1
jax: 0.10.0
libtpu: 0.0.40
codegen_flags: <defaults>
</compile_context>

<pallas_src>
import jax
import jax.numpy as jnp
from jax.experimental import pallas as pl
from jax.experimental.pallas import tpu as pltpu

_MIB = 1024 * 1024


def _broadcast_table_kernel(table_ref, out_ref):
    # table_ref: (1, TF) lane-dense slice of the flat embedding table.
    # out_ref:   (TB, TF) output tile — a single broadcast store per step.
    out_ref[...] = jnp.broadcast_to(table_ref[...], out_ref.shape)


def _chip_kind():
    try:
        return jax.devices()[0].device_kind.lower()
    except Exception:
        return ""


def _gen_config():
    """Per-generation tiling / VMEM parameters."""
    kind = _chip_kind()
    if "v7" in kind:
        # ~3.2 TB/s HBM -> bigger tiles; 2 TCs/chip -> even grid split;
        # only 64 MiB physical VMEM.
        return dict(target_tile=10 * _MIB, default_scoped=32 * _MIB,
                    phys_cap=56 * _MIB, even_split=True)
    if "v6" in kind:
        return dict(target_tile=8 * _MIB, default_scoped=32 * _MIB,
                    phys_cap=100 * _MIB, even_split=False)
    if "v5" in kind:
        # 16 MiB default scoped VMEM -> keep tiles modest (double-buffered
        # output + table buffers must fit without raising the limit).
        return dict(target_tile=5 * _MIB, default_scoped=16 * _MIB,
                    phys_cap=100 * _MIB, even_split=False)
    # Unknown chip: conservative defaults.
    return dict(target_tile=6 * _MIB, default_scoped=16 * _MIB,
                phys_cap=56 * _MIB, even_split=False)


def _pick_tiles(batch_size, f_pad, itemsize, cfg):
    """Pick (TB rows, TF lanes) per grid step."""
    row_bytes = f_pad * itemsize
    target = cfg["target_tile"]

    if row_bytes > target:
        # Very large node_num * D: tile the lane axis too so one block never
        # exceeds the VMEM budget (robustness fix from review).
        tf = max(128, ((target // (8 * itemsize)) // 128) * 128)
        tf = min(tf, f_pad)
        tb = min(batch_size, 8)
        return tb, tf

    tf = f_pad
    tb = max(1, target // max(1, row_bytes))
    if tb >= batch_size:
        return batch_size, tf

    tb = max(8, (tb // 8) * 8)  # sublane multiple
    if cfg["even_split"]:
        # v7x: make the batch-step count even with near-equal halves so both
        # TensorCores get balanced work under dimension_semantics="parallel".
        nsteps = pl.cdiv(batch_size, tb)
        if nsteps % 2:
            nsteps += 1
        tb_even = -(-batch_size // nsteps)          # ceil
        tb_even = ((tb_even + 7) // 8) * 8          # keep sublane multiple
        tb = min(max(8, tb_even), batch_size)
    return tb, tf


def _vmem_limit(tb, tf, itemsize, cfg):
    """Raise the scoped-VMEM limit only when the pipeline buffers need it."""
    needed = 2 * tb * tf * itemsize + 2 * tf * itemsize + 2 * _MIB
    if needed <= cfg["default_scoped"]:
        return None
    return int(min(needed, cfg["phys_cap"]))


def start_end_embedding(start_emb, middle_dummy, end_emb, batch_size):
    """Pallas equivalent of StartEndEmbedding.forward(batch_size).

    start_emb:    (1, D)
    middle_dummy: (node_num - 2, D)
    end_emb:      (1, D)
    returns:      (batch_size, node_num, D)
    """
    d = start_emb.shape[-1]
    node_num = middle_dummy.shape[0] + 2
    dtype = start_emb.dtype
    f = node_num * d  # flat (lane) width of one table row

    # One-time wrapper glue (outside the grid loop): build the (node_num, D)
    # table, flatten it lane-dense, and pad the lane width to a multiple of
    # 128 so every store in the kernel is a full, unmasked vst.
    table = jnp.concatenate(
        [start_emb.astype(dtype), middle_dummy.astype(dtype),
         end_emb.astype(dtype)], axis=0)
    table_flat = table.reshape(1, f)
    f_pad = ((f + 127) // 128) * 128
    if f_pad != f:
        table_flat = jnp.pad(table_flat, ((0, 0), (0, f_pad - f)))

    itemsize = jnp.dtype(dtype).itemsize
    cfg = _gen_config()
    tb, tf = _pick_tiles(batch_size, f_pad, itemsize, cfg)
    grid = (pl.cdiv(batch_size, tb), pl.cdiv(f_pad, tf))

    # Pure HBM-write traffic: tell the XLA scheduler so it can overlap
    # surrounding ops.
    cost = pl.CostEstimate(
        flops=0,
        transcendentals=0,
        bytes_accessed=batch_size * f_pad * itemsize
        + grid[0] * grid[1] * tf * itemsize)

    out_flat = pl.pallas_call(
        _broadcast_table_kernel,
        out_shape=jax.ShapeDtypeStruct((batch_size, f_pad), dtype),
        grid_spec=pltpu.PrefetchScalarGridSpec(
            num_scalar_prefetch=0,
            grid=grid,
            in_specs=[pl.BlockSpec((1, tf), lambda b, j: (0, j))],
            out_specs=pl.BlockSpec((tb, tf), lambda b, j: (b, j)),
        ),
        compiler_params=pltpu.CompilerParams(
            dimension_semantics=("parallel", "parallel"),
            vmem_limit_bytes=_vmem_limit(tb, tf, itemsize, cfg)),
        cost_estimate=cost,
    )(table_flat)

    if f_pad != f:
        out_flat = out_flat[:, :f]
    # Reshape back to the module's (batch, node_num, D) layout (wrapper-side).
    return out_flat.reshape(batch_size, node_num, d)


if __name__ == "__main__":
    node_num = 8
    embedding_dim = 32
    batch_size = 2

    key = jax.random.PRNGKey(0)
    k_start, k_end = jax.random.split(key)

    # Deterministic parameter init mirroring the PyTorch module:
    #   start/end ~ Uniform(-1, 1) of shape (1, D); middle_dummy = zeros(N-2, D)
    start_emb = jax.random.uniform(
        k_start, (1, embedding_dim), minval=-1.0, maxval=1.0,
        dtype=jnp.float32)
    end_emb = jax.random.uniform(
        k_end, (1, embedding_dim), minval=-1.0, maxval=1.0,
        dtype=jnp.float32)
    middle_dummy = jnp.zeros((node_num - 2, embedding_dim), dtype=jnp.float32)

    out = start_end_embedding(start_emb, middle_dummy, end_emb, batch_size)
    out = jax.block_until_ready(out)

    # Reference check (plain JAX), mirroring torch.cat + expand.
    table_ref = jnp.concatenate([start_emb, middle_dummy, end_emb], axis=0)
    ref = jnp.broadcast_to(table_ref[None, :, :],
                           (batch_size, node_num, embedding_dim))
    assert out.shape == (batch_size, node_num, embedding_dim)
    assert out.dtype == jnp.float32
    assert jnp.allclose(out, ref), "mismatch vs reference"

    print("KERNEL_OK")
</pallas_src>

<mosaic_0001>
module attributes {stable_mosaic.version = 11 : i64} {
  func.func @_broadcast_table_kernel(%arg0: i32, %arg1: i32, %arg2: memref<1x256xf32, #tpu.memory_space<vmem>>, %arg3: memref<2x256xf32, #tpu.memory_space<vmem>>) attributes {dimension_semantics = [#tpu.dimension_semantics<parallel>, #tpu.dimension_semantics<parallel>], iteration_bounds = array<i64: 1, 1>, scalar_prefetch = 0 : i64, scratch_operands = 0 : i64, tpu.core_type = #tpu.core_type<tc>, window_params = [{transform_indices = @transform_0, window_bounds = array<i64: 1, 256>}, {transform_indices = @transform_1, window_bounds = array<i64: 2, 256>}]} {
    %c0 = arith.constant 0 : index
    %c0_0 = arith.constant 0 : index
    %0 = vector.load %arg2[%c0, %c0_0] : memref<1x256xf32, #tpu.memory_space<vmem>>, vector<1x256xf32>
    %1 = vector.shape_cast %0 : vector<1x256xf32> to vector<1x256xf32>
    %2 = vector.broadcast %1 : vector<1x256xf32> to vector<2x256xf32>
    %c0_1 = arith.constant 0 : index
    %c0_2 = arith.constant 0 : index
    %3 = vector.load %arg3[%c0_1, %c0_2] : memref<2x256xf32, #tpu.memory_space<vmem>>, vector<2x256xf32>
    tpu.vector_store %arg3[%c0_1, %c0_2], %2 {strides = array<i32>} : memref<2x256xf32, #tpu.memory_space<vmem>>, vector<2x256xf32>,
    return
  }
  func.func @transform_0(%arg0: i32, %arg1: i32) -> (i32, i32) {
    %c0_i32 = arith.constant 0 : i32
    %c0_i32_0 = arith.constant 0 : i32
    return %c0_i32, %arg1 : i32, i32
  }
  func.func @transform_1(%arg0: i32, %arg1: i32) -> (i32, i32) {
    %c0_i32 = arith.constant 0 : i32
    return %arg0, %arg1 : i32, i32
  }
}

</mosaic_0001>

<llo_original>
// kernel: tpu_custom_call.1
$region0: #{tpu_custom_call.1}
  #allocation0 [shape = 'u32[]', space=smem, size = 0x4, offset = 0x4, fixed_abs, tag = 'smem constant byte address 0x4 - core index']
  #allocation1 [shape = 'u32[144,128]{1,0:T(1,128)}', space=vmem, size = 0x12000, scoped, tag = 'internal scratch']
  %s0 = inlined_call_operand.hbm [shape: f32[1,256], index: 0, kind: input, shape index: {}]
  %s1 = inlined_call_operand.hbm [shape: f32[2,256], index: 1, kind: output, shape index: {}]
  %s2 = sld [smem:[#allocation0]]
  $region18: #{tpu_custom_call.1} parent=0
    _
  %s4 = ssub.s32 1, %s2
  %s5 = scalar_select 0, %s4, %s2
  $region1: #{tpu_custom_call.1} parent=0
    #allocation2 [shape = 'u8[1024]{0}', space=vmem, size = 0x400, scoped, tag = 'input window, operand 0, single buffered']
    #allocation3 [shape = 's32[1]{0}', space=sflag, size = 0x4, scoped, tag = 'scoped memory for tpu_custom_call.1']
    #allocation4 [shape = 's32[1]{0}', space=sflag, size = 0x4, scoped, tag = 'scoped memory for tpu_custom_call.1']
    #allocation5 [shape = 'u8[2048]{0}', space=vmem, size = 0x800, scoped, tag = 'output window, operand 0, single buffered']
    %6 = vsyncpa [#allocation3], 0
    %7 = vsyncpa [#allocation4], 0
    // Predicated region
    $region2: #{tpu_custom_call.1} parent=1 // pred_check
      _
    $region3: #{tpu_custom_call.1} parent=1 // pred_check_branch
      %9 = sbr.rel (0) target = $region5
    $region4: #{tpu_custom_call.1} parent=1 // pred_region
      %s11 = ssub.s32 32, 32
      %12 = vsyncadd [#allocation3], %s11
      %s14 = sshll.u32 [#allocation2], 4
      %s15 = int_to_ptr.vmem [resolvable:$true] %s14
      %17 = dma.hbm_to_vmem [thread:$0]  %s0, 32, %s15, [#allocation3]
    $region5: #{tpu_custom_call.1} parent=1 // pred_fallthru
      _
    // Predicated region
    $region6: #{tpu_custom_call.1} parent=1 // pred_check
      _
    $region7: #{tpu_custom_call.1} parent=1 // pred_check_branch
      %19 = sbr.rel (0) target = $region9
    $region8: #{tpu_custom_call.1} parent=1 // pred_region
      %20 = dma.done [#allocation3], 32
    $region9: #{tpu_custom_call.1} parent=1 // pred_fallthru
      _
    %v21 = vld [vmem:[#allocation2] sm:$0x3]
    %v23 = vlaneseq
    %v24 = vshrl.u32 %v23, 7
    %v25 = vsub.s32 0, %v24
    %v26 = vrot.slane %v21, %v25
    %v27 = vlaneseq
    %v28 = vshrl.u32 %v27, 7
    %v29 = vsub.s32 1, %v28
    %v30 = vrot.slane %v21, %v29
    %v31 = vcombine.low %v26, %v30
    %v33 = vunpack.c.l.s4 1983009808
    %v34 = vunpack.c.0.s8 %v33
    %v35 = vlaneseq
    %v36 = vshrl.u32 %v35, 7
    %v37 = vsub.s32 %v34, %v36
    %v38 = vrot.slane %v31, %v37
    %40 = vst [vmem:[#allocation5] sm:$0xf] %v38
    // Predicated region
    $region10: #{tpu_custom_call.1} parent=1 // pred_check
      _
    $region11: #{tpu_custom_call.1} parent=1 // pred_check_branch
      %42 = sbr.rel (0) target = $region13
    $region12: #{tpu_custom_call.1} parent=1 // pred_region
      %s44 = ssub.s32 64, 64
      %45 = vsyncadd [#allocation4], %s44
      %s47 = sshll.u32 [#allocation5], 4
      %s48 = int_to_ptr.vmem [resolvable:$true] %s47
      %50 = dma.vmem_to_hbm [thread:$0]  %s48, 64, %s1, [#allocation4]
    $region13: #{tpu_custom_call.1} parent=1 // pred_fallthru
      _
    // Predicated region
    $region14: #{tpu_custom_call.1} parent=1 // pred_check
      _
    $region15: #{tpu_custom_call.1} parent=1 // pred_check_branch
      %52 = sbr.rel (0) target = $region17
    $region16: #{tpu_custom_call.1} parent=1 // pred_region
      %53 = dma.done [#allocation4], 64
    $region17: #{tpu_custom_call.1} parent=1 // pred_fallthru
      _
    %54 = vsyncpa [#allocation3], 1
    %55 = vsyncpa [#allocation4], 1

</llo_original>
